<compile_context>
chip_gen: v7x
topology: tpu7x:2x2x1
jax: 0.10.0
libtpu: 0.0.40
codegen_flags: <defaults>
</compile_context>

<pallas_src>
import functools
import math

import jax
import jax.numpy as jnp
from jax import lax
from jax.experimental import pallas as pl
from jax.experimental.pallas import tpu as pltpu

_LOG2E = 1.4426950408889634
_VMEM_LIMIT = 64 * 1024 * 1024   # above the 16/32 MiB scoped defaults; within v7x physical
_SEQ_TILE_CAP = 256              # multiple of 128 (v5e MXU) and 256 (v6e/v7x MXU)


def _round_up(x, m):
    return ((x + m - 1) // m) * m


def _proj_kernel(x_ref, w_ref, b_ref, q_ref, kt_ref, v_ref, *, dp):
    """Fused Q/K/V projection for one (batch, seq-tile).

    One wide bf16 MXU matmul; Q / K / V splits fall on 128-lane boundaries
    (dp, vp are multiples of 128).  K is written transposed so the attention
    kernel's score matmul is a plain NN matmul (one transpose per token tile
    instead of one per kv step).
    """
    acc = (
        jnp.dot(x_ref[...], w_ref[...], preferred_element_type=jnp.float32)
        + b_ref[...]
    )
    q = acc[:, :dp]            # norm * log2(e) already folded into Wq/bq
    k = acc[:, dp:2 * dp]
    v = acc[:, 2 * dp:]
    q_ref[...] = q.astype(q_ref.dtype)
    kt_ref[...] = k.T.astype(kt_ref.dtype)
    v_ref[...] = v.astype(v_ref.dtype)


def _attn_kernel(q_ref, kt_ref, v_ref, o_ref, m_s, l_s, acc_s, *,
                 seq_len, tile, needs_mask):
    ki = pl.program_id(2)

    @pl.when(ki == 0)
    def _init():
        m_s[...] = jnp.full_like(m_s, -jnp.inf)
        l_s[...] = jnp.zeros_like(l_s)
        acc_s[...] = jnp.zeros_like(acc_s)

    # Scores (tq, tk): (tq, Dp) @ (Dp, tk) — bf16 operands, f32 accumulation,
    # NN layout (K already transposed), so the MXU consumes it directly.
    s = jnp.dot(q_ref[...], kt_ref[...], preferred_element_type=jnp.float32)

    if needs_mask:  # static Python flag: only traced when the sequence was padded
        kv_pos = ki * tile + lax.broadcasted_iota(jnp.int32, s.shape, 1)
        s = jnp.where(kv_pos < seq_len, s, -jnp.inf)

    # Online softmax in the base-2 domain (norm * log2e folded into Q).
    m_prev = m_s[...]
    m_new = jnp.maximum(m_prev, jnp.max(s, axis=-1, keepdims=True))
    alpha = jnp.exp2(m_prev - m_new)
    p = jnp.exp2(s - m_new)
    l_s[...] = alpha * l_s[...] + jnp.sum(p, axis=-1, keepdims=True)
    acc_s[...] = alpha * acc_s[...] + jnp.dot(
        p.astype(v_ref.dtype), v_ref[...], preferred_element_type=jnp.float32)
    m_s[...] = m_new

    @pl.when(ki == pl.num_programs(2) - 1)
    def _finalize():
        # Exact divide: finalize runs once per query tile, so the cost is
        # negligible and it avoids the approximate-reciprocal error.
        o_ref[...] = (acc_s[...] / l_s[...]).astype(o_ref.dtype)


def self_attention_pallas(x, wq, bq, wk, bk, wv, bv, *, tile=None):
    """x: (B, N, I); wq/wk: (D, I), wv: (V, I) in PyTorch nn.Linear (out, in) layout."""
    B, N, I = x.shape
    D = wq.shape[0]
    V = wv.shape[0]
    norm = 1.0 / math.sqrt(D)

    # Lane-aligned (128-multiple) projected widths: fused Q|K|V split is free
    # and every store (projection outputs + attention output) is lane-dense.
    Dp = _round_up(D, 128)
    Vp = _round_up(V, 128)
    Wtot = 2 * Dp + Vp

    if tile is None:
        tile = min(_SEQ_TILE_CAP, _round_up(N, 8))
    n_pad = _round_up(N, tile)
    nt = n_pad // tile
    needs_mask = n_pad != N

    # Pad the sequence (masked in-kernel) and move to bf16 for MXU throughput.
    x_bf = x
    if needs_mask:
        x_bf = jnp.pad(x_bf, ((0, 0), (0, n_pad - N), (0, 0)))
    x_bf = x_bf.astype(jnp.bfloat16)

    f32 = jnp.float32
    wq_p = jnp.zeros((I, Dp), f32).at[:, :D].set(wq.T * (norm * _LOG2E))
    wk_p = jnp.zeros((I, Dp), f32).at[:, :D].set(wk.T)
    wv_p = jnp.zeros((I, Vp), f32).at[:, :V].set(wv.T)
    w_fused = jnp.concatenate([wq_p, wk_p, wv_p], axis=1).astype(jnp.bfloat16)
    b_fused = jnp.concatenate([
        jnp.zeros((Dp,), f32).at[:D].set(bq * (norm * _LOG2E)),
        jnp.zeros((Dp,), f32).at[:D].set(bk),
        jnp.zeros((Vp,), f32).at[:V].set(bv),
    ]).reshape(1, Wtot)

    # ---------- Pass 1: projected Q (scaled), K^T, V — computed once. ----------
    q_p, kt_p, v_p = pl.pallas_call(
        functools.partial(_proj_kernel, dp=Dp),
        out_shape=(
            jax.ShapeDtypeStruct((B, n_pad, Dp), jnp.bfloat16),
            jax.ShapeDtypeStruct((B, Dp, n_pad), jnp.bfloat16),
            jax.ShapeDtypeStruct((B, n_pad, Vp), jnp.bfloat16),
        ),
        grid_spec=pltpu.PrefetchScalarGridSpec(
            num_scalar_prefetch=0,
            grid=(B, nt),
            in_specs=[
                pl.BlockSpec((None, tile, I), lambda b, ni: (b, ni, 0)),  # x tile
                pl.BlockSpec((I, Wtot), lambda b, ni: (0, 0)),            # [Wq*c | Wk | Wv]^T
                pl.BlockSpec((1, Wtot), lambda b, ni: (0, 0)),            # fused bias (f32)
            ],
            out_specs=[
                pl.BlockSpec((None, tile, Dp), lambda b, ni: (b, ni, 0)),  # Q (scaled)
                pl.BlockSpec((None, Dp, tile), lambda b, ni: (b, 0, ni)),  # K^T
                pl.BlockSpec((None, tile, Vp), lambda b, ni: (b, ni, 0)),  # V
            ],
        ),
        compiler_params=pltpu.CompilerParams(
            dimension_semantics=("parallel", "parallel"),
            vmem_limit_bytes=_VMEM_LIMIT,
        ),
    )(x_bf, w_fused, b_fused)

    # ---------- Pass 2: flash attention over the projected tensors. ----------
    out_pad = pl.pallas_call(
        functools.partial(_attn_kernel, seq_len=N, tile=tile, needs_mask=needs_mask),
        out_shape=jax.ShapeDtypeStruct((B, n_pad, Vp), jnp.float32),
        grid_spec=pltpu.PrefetchScalarGridSpec(
            num_scalar_prefetch=0,
            grid=(B, nt, nt),
            in_specs=[
                pl.BlockSpec((None, tile, Dp), lambda b, qi, ki: (b, qi, 0)),  # Q tile
                pl.BlockSpec((None, Dp, tile), lambda b, qi, ki: (b, 0, ki)),  # K^T tile
                pl.BlockSpec((None, tile, Vp), lambda b, qi, ki: (b, ki, 0)),  # V tile
            ],
            out_specs=pl.BlockSpec((None, tile, Vp), lambda b, qi, ki: (b, qi, 0)),
            scratch_shapes=[
                pltpu.VMEM((tile, 1), jnp.float32),    # running max (base-2)
                pltpu.VMEM((tile, 1), jnp.float32),    # running denominator
                pltpu.VMEM((tile, Vp), jnp.float32),   # output accumulator
            ],
        ),
        compiler_params=pltpu.CompilerParams(
            dimension_semantics=("parallel", "parallel", "arbitrary"),
            vmem_limit_bytes=_VMEM_LIMIT,
        ),
    )(q_p, kt_p, v_p)

    # TODO(synk): for D, V << 128 a further MXU-utilization win is packing
    # several batches/heads into the 128-lane dim instead of zero-padding.
    return out_pad[:, :N, :V].astype(x.dtype)


def self_attention_ref(x, wq, bq, wk, bk, wv, bv):
    """Pure-JAX reference mirroring the PyTorch forward (f32)."""
    D = wq.shape[0]
    norm = 1.0 / math.sqrt(D)
    q = jnp.einsum("bni,di->bnd", x, wq) + bq
    k = jnp.einsum("bni,di->bnd", x, wk) + bk
    v = jnp.einsum("bni,vi->bnv", x, wv) + bv
    s = jnp.einsum("bnd,bmd->bnm", q, k) * norm
    a = jax.nn.softmax(s, axis=-1)
    return jnp.einsum("bnm,bmv->bnv", a, v)


if __name__ == "__main__":
    # Small shapes consistent with the module: i (input feat), d (qk dim), v (value dim)
    B, N, I, D, V = 2, 8, 32, 16, 16

    key = jax.random.PRNGKey(0)
    kx, kq, kbq, kk, kbk, kv, kbv, kx2 = jax.random.split(key, 8)

    x = jax.random.normal(kx, (B, N, I), dtype=jnp.float32)

    # Deterministic synthetic parameters, PyTorch nn.Linear layout (out, in).
    bound = 1.0 / math.sqrt(I)
    wq = jax.random.uniform(kq, (D, I), minval=-bound, maxval=bound, dtype=jnp.float32)
    bq = jax.random.uniform(kbq, (D,), minval=-bound, maxval=bound, dtype=jnp.float32)
    wk = jax.random.uniform(kk, (D, I), minval=-bound, maxval=bound, dtype=jnp.float32)
    bk = jax.random.uniform(kbk, (D,), minval=-bound, maxval=bound, dtype=jnp.float32)
    wv = jax.random.uniform(kv, (V, I), minval=-bound, maxval=bound, dtype=jnp.float32)
    bv = jax.random.uniform(kbv, (V,), minval=-bound, maxval=bound, dtype=jnp.float32)

    # Tolerance accounts for bf16 MXU operands (f32 accumulation).
    TOL = 2e-2

    out = self_attention_pallas(x, wq, bq, wk, bk, wv, bv)
    out = jax.block_until_ready(out)
    ref = self_attention_ref(x, wq, bq, wk, bk, wv, bv)
    assert out.shape == (B, N, V)
    assert jnp.allclose(out, ref, atol=TOL, rtol=TOL), "mismatch vs reference"

    # Second check: non-tile-multiple sequence length exercises the padding /
    # in-kernel masking path.
    N2 = 12
    x2 = jax.random.normal(kx2, (B, N2, I), dtype=jnp.float32)
    out2 = self_attention_pallas(x2, wq, bq, wk, bk, wv, bv)
    out2 = jax.block_until_ready(out2)
    ref2 = self_attention_ref(x2, wq, bq, wk, bk, wv, bv)
    assert out2.shape == (B, N2, V)
    assert jnp.allclose(out2, ref2, atol=TOL, rtol=TOL), "mismatch vs reference (padded)"

    print("KERNEL_OK")
</pallas_src>

<mosaic_0001>
module attributes {stable_mosaic.version = 11 : i64} {
  func.func @_proj_kernel(%arg0: i32, %arg1: i32, %arg2: memref<1x8x32xbf16, #tpu.memory_space<vmem>>, %arg3: memref<32x384xbf16, #tpu.memory_space<vmem>>, %arg4: memref<1x384xf32, #tpu.memory_space<vmem>>, %arg5: memref<1x8x128xbf16, #tpu.memory_space<vmem>>, %arg6: memref<1x128x8xbf16, #tpu.memory_space<vmem>>, %arg7: memref<1x8x128xbf16, #tpu.memory_space<vmem>>) attributes {dimension_semantics = [#tpu.dimension_semantics<parallel>, #tpu.dimension_semantics<parallel>], iteration_bounds = array<i64: 2, 1>, scalar_prefetch = 0 : i64, scratch_operands = 0 : i64, tpu.core_type = #tpu.core_type<tc>, window_params = [{transform_indices = @transform_0, window_bounds = array<i64: 1, 8, 32>}, {pipeline_mode = #tpu.pipeline_mode<synchronous>, transform_indices = @transform_1, window_bounds = array<i64: 32, 384>}, {pipeline_mode = #tpu.pipeline_mode<synchronous>, transform_indices = @transform_2, window_bounds = array<i64: 1, 384>}, {transform_indices = @transform_3, window_bounds = array<i64: 1, 8, 128>}, {transform_indices = @transform_4, window_bounds = array<i64: 1, 128, 8>}, {transform_indices = @transform_5, window_bounds = array<i64: 1, 8, 128>}]} {
    %c0 = arith.constant 0 : index
    %c0_0 = arith.constant 0 : index
    %c0_1 = arith.constant 0 : index
    %0 = vector.load %arg2[%c0, %c0_0, %c0_1] : memref<1x8x32xbf16, #tpu.memory_space<vmem>>, vector<1x8x32xbf16>
    %1 = vector.shape_cast %0 : vector<1x8x32xbf16> to vector<8x32xbf16>
    %c0_2 = arith.constant 0 : index
    %c0_3 = arith.constant 0 : index
    %2 = vector.load %arg3[%c0_2, %c0_3] : memref<32x384xbf16, #tpu.memory_space<vmem>>, vector<32x384xbf16>
    %cst = arith.constant dense<0.000000e+00> : vector<8x384xf32>
    %3 = tpu.matmul %1, %2, %cst {dimension_numbers = #tpu.dot_dimension_numbers<[1], [0], [0], [1], [0, 0, 1, 1], [], []>} : vector<8x32xbf16>, vector<32x384xbf16>, vector<8x384xf32> -> vector<8x384xf32>
    %c0_4 = arith.constant 0 : index
    %c0_5 = arith.constant 0 : index
    %4 = vector.load %arg4[%c0_4, %c0_5] : memref<1x384xf32, #tpu.memory_space<vmem>>, vector<1x384xf32>
    %5 = vector.broadcast %4 : vector<1x384xf32> to vector<8x384xf32>
    %6 = arith.addf %3, %5 : vector<8x384xf32>
    %7 = vector.extract_strided_slice %6 {offsets = [0, 0], sizes = [8, 128], strides = [1, 1]} : vector<8x384xf32> to vector<8x128xf32>
    %8 = vector.extract_strided_slice %6 {offsets = [0, 128], sizes = [8, 128], strides = [1, 1]} : vector<8x384xf32> to vector<8x128xf32>
    %9 = vector.extract_strided_slice %6 {offsets = [0, 256], sizes = [8, 128], strides = [1, 1]} : vector<8x384xf32> to vector<8x128xf32>
    %10 = arith.truncf %7 : vector<8x128xf32> to vector<8x128xbf16>
    %c0_6 = arith.constant 0 : index
    %c0_7 = arith.constant 0 : index
    %c0_8 = arith.constant 0 : index
    %11 = vector.load %arg5[%c0_6, %c0_7, %c0_8] : memref<1x8x128xbf16, #tpu.memory_space<vmem>>, vector<1x8x128xbf16>
    %12 = vector.shape_cast %11 : vector<1x8x128xbf16> to vector<8x128xbf16>
    %13 = vector.shape_cast %10 : vector<8x128xbf16> to vector<1x8x128xbf16>
    tpu.vector_store %arg5[%c0_6, %c0_7, %c0_8], %13 {strides = array<i32>} : memref<1x8x128xbf16, #tpu.memory_space<vmem>>, vector<1x8x128xbf16>,
    %14 = tpu.transpose %8, [1, 0] : vector<8x128xf32> -> vector<128x8xf32>
    %15 = arith.truncf %14 : vector<128x8xf32> to vector<128x8xbf16>
    %c0_9 = arith.constant 0 : index
    %c0_10 = arith.constant 0 : index
    %c0_11 = arith.constant 0 : index
    %16 = vector.load %arg6[%c0_9, %c0_10, %c0_11] : memref<1x128x8xbf16, #tpu.memory_space<vmem>>, vector<1x128x8xbf16>
    %17 = vector.shape_cast %16 : vector<1x128x8xbf16> to vector<128x8xbf16>
    %18 = vector.shape_cast %15 : vector<128x8xbf16> to vector<1x128x8xbf16>
    tpu.vector_store %arg6[%c0_9, %c0_10, %c0_11], %18 {strides = array<i32>} : memref<1x128x8xbf16, #tpu.memory_space<vmem>>, vector<1x128x8xbf16>,
    %19 = arith.truncf %9 : vector<8x128xf32> to vector<8x128xbf16>
    %c0_12 = arith.constant 0 : index
    %c0_13 = arith.constant 0 : index
    %c0_14 = arith.constant 0 : index
    %20 = vector.load %arg7[%c0_12, %c0_13, %c0_14] : memref<1x8x128xbf16, #tpu.memory_space<vmem>>, vector<1x8x128xbf16>
    %21 = vector.shape_cast %20 : vector<1x8x128xbf16> to vector<8x128xbf16>
    %22 = vector.shape_cast %19 : vector<8x128xbf16> to vector<1x8x128xbf16>
    tpu.vector_store %arg7[%c0_12, %c0_13, %c0_14], %22 {strides = array<i32>} : memref<1x8x128xbf16, #tpu.memory_space<vmem>>, vector<1x8x128xbf16>,
    return
  }
  func.func @transform_0(%arg0: i32, %arg1: i32) -> (i32, i32, i32) {
    %c0_i32 = arith.constant 0 : i32
    %c0_i32_0 = arith.constant 0 : i32
    return %arg0, %arg1, %c0_i32 : i32, i32, i32
  }
  func.func @transform_1(%arg0: i32, %arg1: i32) -> (i32, i32) {
    %c0_i32 = arith.constant 0 : i32
    %c0_i32_0 = arith.constant 0 : i32
    %c0_i32_1 = arith.constant 0 : i32
    return %c0_i32, %c0_i32_0 : i32, i32
  }
  func.func @transform_2(%arg0: i32, %arg1: i32) -> (i32, i32) {
    %c0_i32 = arith.constant 0 : i32
    %c0_i32_0 = arith.constant 0 : i32
    %c0_i32_1 = arith.constant 0 : i32
    return %c0_i32, %c0_i32_0 : i32, i32
  }
  func.func @transform_3(%arg0: i32, %arg1: i32) -> (i32, i32, i32) {
    %c0_i32 = arith.constant 0 : i32
    %c0_i32_0 = arith.constant 0 : i32
    return %arg0, %arg1, %c0_i32 : i32, i32, i32
  }
  func.func @transform_4(%arg0: i32, %arg1: i32) -> (i32, i32, i32) {
    %c0_i32 = arith.constant 0 : i32
    %c0_i32_0 = arith.constant 0 : i32
    return %arg0, %c0_i32, %arg1 : i32, i32, i32
  }
  func.func @transform_5(%arg0: i32, %arg1: i32) -> (i32, i32, i32) {
    %c0_i32 = arith.constant 0 : i32
    %c0_i32_0 = arith.constant 0 : i32
    return %arg0, %arg1, %c0_i32 : i32, i32, i32
  }
}

</mosaic_0001>

<llo_original>
// kernel: tpu_custom_call.1
$region0: #{tpu_custom_call.1}
  #allocation0 [shape = 'u32[]', space=smem, size = 0x4, offset = 0x4, fixed_abs, tag = 'smem constant byte address 0x4 - core index']
  #allocation1 [shape = 'u32[144,128]{1,0:T(1,128)}', space=vmem, size = 0x12000, scoped, tag = 'internal scratch']
  %s0 = inlined_call_operand.hbm [shape: bf16[2,8,32], index: 0, kind: input, shape index: {}]
  %s1 = inlined_call_operand.hbm [shape: bf16[32,384], index: 1, kind: input, shape index: {}]
  %s2 = inlined_call_operand.hbm [shape: f32[1,384], index: 2, kind: input, shape index: {}]
  %s3 = inlined_call_operand.hbm [shape: bf16[2,8,128], index: 3, kind: output, shape index: {0}]
  %s4 = inlined_call_operand.hbm [shape: bf16[2,128,8], index: 4, kind: output, shape index: {1}]
  %s5 = inlined_call_operand.hbm [shape: bf16[2,8,128], index: 5, kind: output, shape index: {2}]
  %6 = xla_tuple %s3, %s4, %s5
  %s7 = sld [smem:[#allocation0]]
  $region73: #{tpu_custom_call.1} parent=0
    _
  %s9 = ssub.s32 1, %s7
  %s10 = scalar_select 0, %s9, %s7
  $region1: #{tpu_custom_call.1} parent=0
    #allocation2 [shape = 'u8[4096]{0}', space=vmem, size = 0x1000, scoped, tag = 'input window, operand 0']
    #allocation3 [shape = 's32[2]{0}', space=sflag, size = 0x8, scoped, tag = 'scoped memory for tpu_custom_call.1']
    #allocation4 [shape = 's32[2]{0}', space=sflag, size = 0x8, scoped, tag = 'scoped memory for tpu_custom_call.1']
    #allocation5 [shape = 'u8[24576]{0}', space=vmem, size = 0x6000, scoped, tag = 'input window, operand 1, single buffered']
    #allocation6 [shape = 's32[1]{0}', space=sflag, size = 0x4, scoped, tag = 'scoped memory for tpu_custom_call.1']
    #allocation7 [shape = 'u8[1536]{0}', space=vmem, size = 0x800, scoped, tag = 'input window, operand 2, single buffered']
    #allocation8 [shape = 'u8[4096]{0}', space=vmem, size = 0x1000, scoped, tag = 'output window, operand 0']
    #allocation9 [shape = 'u8[65536]{0}', space=vmem, size = 0x10000, scoped, tag = 'output window, operand 1']
    #allocation10 [shape = 's32[2]{0}', space=sflag, size = 0x8, scoped, tag = 'scoped memory for tpu_custom_call.1']
    #allocation11 [shape = 'u8[4096]{0}', space=vmem, size = 0x1000, scoped, tag = 'output window, operand 2']
    %11 = vsyncpa [#allocation3], 0
    %s12 = scalar_lea.sflag [#allocation3], 1
    %13 = vsyncpa %s12, 0
    %14 = vsyncpa [#allocation6], 0
    %15 = vsyncpa [#allocation4], 0
    %s16 = scalar_lea.sflag [#allocation4], 1
    %17 = vsyncpa %s16, 0
    %18 = vsyncpa [#allocation10], 0
    %s19 = scalar_lea.sflag [#allocation10], 1
    %20 = vsyncpa %s19, 0
    loop: start=0, step=1, limit=4
    $region2: #{tpu_custom_call.1} parent=1 // loop_pre_header
      _
    $region3: #{tpu_custom_call.1} parent=1 // loop_header
      %s22 = sphi 0, %s26
      %p23 = scmp.ge.s32.totalorder %s22, 4
      %s29 = sphi 0, %s41
      %s30 = sphi 0, %s37
      %s31 = sphi 0, %s29
      %s32 = sphi 0, %s30
      %s33 = sphi 0, %s31
      %s34 = sphi 0, %s32
      %s46 = sphi 0, %s48
      %s49 = sphi 0, %s46
      %s50 = sphi 0, %s49
      %s66 = sphi 0, %s50
      %s70 = sphi 0, %s70
      %s72 = sphi 0, %s70
      %s73 = sphi 0, %s72
      %s87 = sphi 0, %s73
      %s91 = sphi 0, %s91
      %s93 = sphi 0, %s91
      %s94 = sphi 0, %s93
      %s108 = sphi 0, %s94
      %s116 = sphi 0, %s118
      %s119 = sphi 0, %s116
      %s120 = sphi 0, %s119
      %s136 = sphi 0, %s120
      %s144 = sphi 0, %s146
      %s147 = sphi 0, %s144
      %s148 = sphi 0, %s147
      %s164 = sphi 0, %s148
      %s172 = sphi 0, %s174
      %s175 = sphi 0, %s172
      %s176 = sphi 0, %s175
      %s192 = sphi 0, %s176
    $region4: #{tpu_custom_call.1} parent=1 // loop_header_branch
      %25 = sbr.rel (%p23) target = $region8
    $region5: #{tpu_custom_call.1} parent=1 // loop_body
      %s27 = ssub.s32 %s22, 1
      %s28 = ssub.s32 %s22, 2
      %s35 = sadd.s32 1, %s30
      %p36 = scmp.ge.s32.totalorder %s35, 1
      %s37 = scalar_select %p36, 0, %s35
      %s38 = sadd.s32 1, %s29
      %s39 = scalar_select %p36, %s38, %s29
      %p40 = scmp.ge.s32.totalorder %s39, 2
      %s41 = scalar_select %p40, 0, %s39
      %s42 = ssub.s32 %s29, %s41
      %s43 = ssub.s32 %s30, %s37
      %s44 = sor.u32 %s42, %s43
      %p45 = scmp.eq.s32.totalorder %s44, 0
      %s47 = sadd.s32 %s46, 1
      %s48 = scalar_select %p45, %s46, %s47
      %p51 = pneg %p45
      %p52 = scmp.eq.s32.totalorder %s22, 1
      %p53 = por %p51, %p52
      %p54 = scmp.ne.s32.totalorder %s46, %s49
      %p55 = scmp.eq.s32.totalorder %s22, 0
      %p56 = por %p54, %p55
      %p57 = scmp.ne.s32.totalorder %s46, %s49
      %p58 = scmp.eq.s32.totalorder %s27, 1
      %p59 = por %p57, %p58
      %p60 = scmp.ne.s32.totalorder %s49, %s50
      %p61 = scmp.eq.s32.totalorder %s27, 0
      %p62 = por %p60, %p61
      %p63 = scmp.ne.s32.totalorder %s49, %s50
      %p64 = scmp.eq.s32.totalorder %s28, 1
      %p65 = por %p63, %p64
      %p67 = scmp.ne.s32.totalorder %s50, %s66
      %p68 = scmp.eq.s32.totalorder %s28, 0
      %p69 = por %p67, %p68
      %s71 = sadd.s32 %s70, 1
      %p74 = scmp.eq.s32.totalorder %s22, 1
      %p75 = scmp.ne.s32.totalorder %s70, %s72
      %p76 = scmp.eq.s32.totalorder %s22, 0
      %p77 = por %p75, %p76
      %p78 = scmp.ne.s32.totalorder %s70, %s72
      %p79 = scmp.eq.s32.totalorder %s27, 1
      %p80 = por %p78, %p79
      %p81 = scmp.ne.s32.totalorder %s72, %s73
      %p82 = scmp.eq.s32.totalorder %s27, 0
      %p83 = por %p81, %p82
      %p84 = scmp.ne.s32.totalorder %s72, %s73
      %p85 = scmp.eq.s32.totalorder %s28, 1
      %p86 = por %p84, %p85
      %p88 = scmp.ne.s32.totalorder %s73, %s87
      %p89 = scmp.eq.s32.totalorder %s28, 0
      %p90 = por %p88, %p89
      %s92 = sadd.s32 %s91, 1
      %p95 = scmp.eq.s32.totalorder %s22, 1
      %p96 = scmp.ne.s32.totalorder %s91, %s93
      %p97 = scmp.eq.s32.totalorder %s22, 0
      %p98 = por %p96, %p97
      %p99 = scmp.ne.s32.totalorder %s91, %s93
      %p100 = scmp.eq.s32.totalorder %s27, 1
      %p101 = por %p99, %p100
      %p102 = scmp.ne.s32.totalorder %s93, %s94
      %p103 = scmp.eq.s32.totalorder %s27, 0
      %p104 = por %p102, %p103
      %p105 = scmp.ne.s32.totalorder %s93, %s94
      %p106 = scmp.eq.s32.totalorder %s28, 1
      %p107 = por %p105, %p106
      %p109 = scmp.ne.s32.totalorder %s94, %s108
      %p110 = scmp.eq.s32.totalorder %s28, 0
      %p111 = por %p109, %p110
      %s112 = ssub.s32 %s29, %s41
      %s113 = ssub.s32 %s30, %s37
      %s114 = sor.u32 %s112, %s113
      %p115 = scmp.eq.s32.totalorder %s114, 0
      %s117 = sadd.s32 %s116, 1
      %s118 = scalar_select %p115, %s116, %s117
      %p121 = pneg %p115
      %p122 = scmp.eq.s32.totalorder %s22, 1
      %p123 = por %p121, %p122
      %p124 = scmp.ne.s32.totalorder %s116, %s119
      %p125 = scmp.eq.s32.totalorder %s22, 0
      %p126 = por %p124, %p125
      %p127 = scmp.ne.s32.totalorder %s116, %s119
      %p128 = scmp.eq.s32.totalorder %s27, 1
      %p129 = por %p127, %p128
      %p130 = scmp.ne.s32.totalorder %s119, %s120
      %p131 = scmp.eq.s32.totalorder %s27, 0
      %p132 = por %p130, %p131
      %p133 = scmp.ne.s32.totalorder %s119, %s120
      %p134 = scmp.eq.s32.totalorder %s28, 1
      %p135 = por %p133, %p134
      %p137 = scmp.ne.s32.totalorder %s120, %s136
      %p138 = scmp.eq.s32.totalorder %s28, 0
      %p139 = por %p137, %p138
      %s140 = ssub.s32 %s29, %s41
      %s141 = ssub.s32 %s30, %s37
      %s142 = sor.u32 %s140, %s141
      %p143 = scmp.eq.s32.totalorder %s142, 0
      %s145 = sadd.s32 %s144, 1
      %s146 = scalar_select %p143, %s144, %s145
      %p149 = pneg %p143
      %p150 = scmp.eq.s32.totalorder %s22, 1
      %p151 = por %p149, %p150
      %p152 = scmp.ne.s32.totalorder %s144, %s147
      %p153 = scmp.eq.s32.totalorder %s22, 0
      %p154 = por %p152, %p153
      %p155 = scmp.ne.s32.totalorder %s144, %s147
      %p156 = scmp.eq.s32.totalorder %s27, 1
      %p157 = por %p155, %p156
      %p158 = scmp.ne.s32.totalorder %s147, %s148
      %p159 = scmp.eq.s32.totalorder %s27, 0
      %p160 = por %p158, %p159
      %p161 = scmp.ne.s32.totalorder %s147, %s148
      %p162 = scmp.eq.s32.totalorder %s28, 1
      %p163 = por %p161, %p162
      %p165 = scmp.ne.s32.totalorder %s148, %s164
      %p166 = scmp.eq.s32.totalorder %s28, 0
      %p167 = por %p165, %p166
      %s168 = ssub.s32 %s29, %s41
      %s169 = ssub.s32 %s30, %s37
      %s170 = sor.u32 %s168, %s169
      %p171 = scmp.eq.s32.totalorder %s170, 0
      %s173 = sadd.s32 %s172, 1
      %s174 = scalar_select %p171, %s172, %s173
      %p177 = pneg %p171
      %p178 = scmp.eq.s32.totalorder %s22, 1
      %p179 = por %p177, %p178
      %p180 = scmp.ne.s32.totalorder %s172, %s175
      %p181 = scmp.eq.s32.totalorder %s22, 0
      %p182 = por %p180, %p181
      %p183 = scmp.ne.s32.totalorder %s172, %s175
      %p184 = scmp.eq.s32.totalorder %s27, 1
      %p185 = por %p183, %p184
      %p186 = scmp.ne.s32.totalorder %s175, %s176
      %p187 = scmp.eq.s32.totalorder %s27, 0
      %p188 = por %p186, %p187
      %p189 = scmp.ne.s32.totalorder %s175, %s176
      %p190 = scmp.eq.s32.totalorder %s28, 1
      %p191 = por %p189, %p190
      %p193 = scmp.ne.s32.totalorder %s176, %s192
      %p194 = scmp.eq.s32.totalorder %s28, 0
      %p195 = por %p193, %p194
      %p196 = scmp.le.s32.totalorder 1, %s22
      %p197 = scmp.lt.s32.totalorder %s22, 3
      %p198 = pnand %p196, %p197
      %p199 = pneg %p198
      // Predicated region
      $region9: #{tpu_custom_call.1} parent=5 // pred_check
        _
      $region10: #{tpu_custom_call.1} parent=5 // pred_check_branch
        %201 = sbr.rel (%p198) target = $region12
      $region11: #{tpu_custom_call.1} parent=5 // pred_region
        %s202 = ssub.s32 %s22, 1
        // Predicated region
        $region13: #{tpu_custom_call.1} parent=11 // pred_check
          %p203 = pneg %p83
        $region14: #{tpu_custom_call.1} parent=11 // pred_check_branch
          %205 = sbr.rel (%p203) target = $region16
        $region15: #{tpu_custom_call.1} parent=11 // pred_region
          %s207 = ssub.s32 768, 768
          %208 = vsyncadd [#allocation6], %s207
          %s209 = sshll.u32 [#allocation5], 4
          %s210 = int_to_ptr.vmem [resolvable:$true] %s209
          %215 = dma.hbm_to_vmem [thread:$0]  %s1, 768, %s210, [#allocation6], 192, 192, 12
        $region16: #{tpu_custom_call.1} parent=11 // pred_fallthru
          _
        // Predicated region
        $region17: #{tpu_custom_call.1} parent=11 // pred_check
          %p216 = pneg %p104
        $region18: #{tpu_custom_call.1} parent=11 // pred_check_branch
          %218 = sbr.rel (%p216) target = $region20
        $region19: #{tpu_custom_call.1} parent=11 // pred_region
          %s220 = ssub.s32 48, 48
          %221 = vsyncadd [#allocation6], %s220
          %s223 = sshll.u32 [#allocation7], 4
          %s224 = int_to_ptr.vmem [resolvable:$true] %s223
          %226 = dma.hbm_to_vmem [thread:$0]  %s2, 48, %s224, [#allocation6]
        $region20: #{tpu_custom_call.1} parent=11 // pred_fallthru
          _
      $region12: #{tpu_custom_call.1} parent=5 // pred_fallthru
        _
      %p227 = scmp.lt.s32.totalorder %s22, 2
      // Predicated region
      $region21: #{tpu_custom_call.1} parent=5 // pred_check
        %p228 = pneg %p227
      $region22: #{tpu_custom_call.1} parent=5 // pred_check_branch
        %230 = sbr.rel (%p228) target = $region24
      $region23: #{tpu_custom_call.1} parent=5 // pred_region
        // Predicated region
        $region25: #{tpu_custom_call.1} parent=23 // pred_check
          %p231 = pneg %p56
        $region26: #{tpu_custom_call.1} parent=23 // pred_check_branch
          %233 = sbr.rel (%p231) target = $region28
        $region27: #{tpu_custom_call.1} parent=23 // pred_region
          %s234 = sand.u32 %s46, 1
          %s235 = scalar_lea.sflag [#allocation3], %s234
          %s236 = sand.u32 %s46, 1
          %s237 = smul.addr %s236, 4
          %s238 = scalar_lea.vmem [#allocation2], %s237
          %s240 = ssub.s32 64, 64
          %241 = vsyncadd %s235, %s240
          %s242 = sadd.s32 %s30, %s29
          %s243 = smul.addr %s242, 64
          %s244 = scalar_lea.hbm %s0, %s243
          %s246 = sshll.u32 %s238, 4
          %s247 = int_to_ptr.vmem [resolvable:$true] %s246
          %249 = dma.hbm_to_vmem [thread:$0]  %s244, 64, %s247, %s235
        $region28: #{tpu_custom_call.1} parent=23 // pred_fallthru
          _
      $region24: #{tpu_custom_call.1} parent=5 // pred_fallthru
        _
      %p250 = scmp.le.s32.totalorder 1, %s22
      %p251 = scmp.lt.s32.totalorder %s22, 3
      %p252 = pnand %p250, %p251
      %p253 = pneg %p252
      // Predicated region
      $region29: #{tpu_custom_call.1} parent=5 // pred_check
        _
      $region30: #{tpu_custom_call.1} parent=5 // pred_check_branch
        %255 = sbr.rel (%p252) target = $region32
      $region31: #{tpu_custom_call.1} parent=5 // pred_region
        %s256 = ssub.s32 %s22, 1
        %s257 = sand.u32 %s49, 1
        %s258 = scalar_lea.sflag [#allocation3], %s257
        %s259 = sand.u32 %s49, 1
        %s260 = smul.addr %s259, 4
        %s261 = scalar_lea.vmem [#allocation2], %s260
        // Predicated region
        $region33: #{tpu_custom_call.1} parent=31 // pred_check
          %p262 = pneg %p62
        $region34: #{tpu_custom_call.1} parent=31 // pred_check_branch
          %264 = sbr.rel (%p262) target = $region36
        $region35: #{tpu_custom_call.1} parent=31 // pred_region
          %265 = dma.done %s258, 64
        $region36: #{tpu_custom_call.1} parent=31 // pred_fallthru
          _
        // Predicated region
        $region37: #{tpu_custom_call.1} parent=31 // pred_check
          %p266 = pneg %p83
        $region38: #{tpu_custom_call.1} parent=31 // pred_check_branch
          %268 = sbr.rel (%p266) target = $region40
        $region39: #{tpu_custom_call.1} parent=31 // pred_region
          %269 = dma.done [#allocation6], 768
        $region40: #{tpu_custom_call.1} parent=31 // pred_fallthru
          _
        // Predicated region
        $region41: #{tpu_custom_call.1} parent=31 // pred_check
          %p270 = pneg %p104
        $region42: #{tpu_custom_call.1} parent=31 // pred_check_branch
          %272 = sbr.rel (%p270) target = $region44
        $region43: #{tpu_custom_call.1} parent=31 // pred_region
          %273 = dma.done [#allocation6], 48
        $region44: #{tpu_custom_call.1} parent=31 // pred_fallthru
          _
        %s274 = sand.u32 %s49, 1
        %s275 = scalar_lea.sflag [#allocation3], %s274
        %s276 = sand.u32 %s49, 1
        %s277 = smul.addr %s276, 4
        %s278 = scalar_lea.vmem [#allocation2], %s277
        %p279 = pneg %p62
        %p280 = pneg %p59
        %p281 = pneg %p83
        %p282 = pneg %p80
        %p283 = pneg %p104
        %p284 = pneg %p101
        %p285 = pneg %p132
        %p286 = pneg %p129
        %s287 = sand.u32 %s119, 1
        %s288 = scalar_lea.sflag [#allocation4], %s287
        %s289 = sand.u32 %s119, 1
        %s290 = smul.addr %s289, 4
        %s291 = scalar_lea.vmem [#allocation8], %s290
        %p292 = pneg %p160
        %p293 = pneg %p157
        %s294 = sand.u32 %s27, 1
        %s295 = scalar_lea.sflag [#allocation10], %s294
        %s296 = sand.u32 %s147, 1
        %s297 = smul.addr %s296, 64
        %s298 = scalar_lea.vmem [#allocation9], %s297
        %p299 = pneg %p188
        %p300 = pneg %p185
        %s301 = sand.u32 %s27, 1
        %s302 = scalar_lea.sflag [#allocation10], %s301
        %s303 = sand.u32 %s175, 1
        %s304 = smul.addr %s303, 4
        %s305 = scalar_lea.vmem [#allocation11], %s304
        %v307 = vld [vmem:[%s261] sm:$0xf]
        %v308 = vld [vmem:[#allocation5] sm:$0xff]
        %v309 = vld [vmem:[#allocation5 + $0x8] sm:$0xf]
        %v310 = vld [vmem:[#allocation5 + $0xc] sm:$0xff]
        %v311 = vld [vmem:[#allocation5 + $0x14] sm:$0xf]
        %v312 = vld [vmem:[#allocation5 + $0x18] sm:$0xff]
        %v313 = vld [vmem:[#allocation5 + $0x20] sm:$0xf]
        %v314 = vld [vmem:[#allocation5 + $0x24] sm:$0xff]
        %v315 = vld [vmem:[#allocation5 + $0x2c] sm:$0xf]
        %v316 = vld [vmem:[#allocation7] sm:$0x7]
        %v318 = vlaneseq
        %v319 = vshrl.u32 %v318, 7
        %v320 = vsub.s32 0, %v319
        %v321 = vrot.slane %v316, %v320
        %v322 = vlaneseq
        %v323 = vshrl.u32 %v322, 7
        %v324 = vsub.s32 1, %v323
        %v325 = vrot.slane %v316, %v324
        %v326 = vlaneseq
        %v327 = vshrl.u32 %v326, 7
        %v328 = vsub.s32 2, %v327
        %v329 = vrot.slane %v316, %v328
        %v341 = vunpack.c.l.b16 %v308
        %v342 = vunpack.c.h.b16 %v308
        %v343 = vunpack.c.l.b16 %v309
        %v344 = vunpack.c.l.b16 %v310
        %v345 = vunpack.c.h.b16 %v310
        %v346 = vunpack.c.l.b16 %v311
        %v347 = vunpack.c.l.b16 %v312
        %v348 = vunpack.c.h.b16 %v312
        %v349 = vunpack.c.l.b16 %v313
        %v350 = vunpack.c.l.b16 %v314
        %v351 = vunpack.c.h.b16 %v314
        %v352 = vunpack.c.l.b16 %v315
        %v353 = vpack.c.b16 %v344, %v341
        %v354 = vpack.c.b16 %v345, %v342
        %v355 = vpack.c.b16 %v346, %v343
        %v356 = vpack.c.b16 %v350, %v347
        %v357 = vpack.c.b16 %v351, %v348
        %v358 = vpack.c.b16 %v352, %v349
        %vm365 = vcmask 261120
        %v367 = vsel %vm365, %v307, 0
        %369 = vmatprep.subr.bf16.mxu0 %v354
        %370 = vmatpush1.bf16.msra.mxu0 %v353
        %371 = vmatprep.subr.bf16.mxu0 %v357
        %372 = vmatpush1.bf16.msra.mxu0 %v356
        %373 = vmatprep.subr.bf16.mxu0 0
        %374 = vmatpush1.bf16.msra.mxu0 0
        %375 = vmatprep.subr.bf16.mxu0 0
        %376 = vmatpush1.bf16.msra.mxu0 0
        %377 = vmatprep.subr.bf16.mxu0 0
        %378 = vmatpush1.bf16.msra.mxu0 0
        %379 = vmatprep.subr.bf16.mxu0 0
        %380 = vmatpush1.bf16.msra.mxu0 0
        %381 = vmatprep.subr.bf16.mxu0 0
        %382 = vmatpush1.bf16.msra.mxu0 0
        %383 = vmatprep.subr.bf16.mxu0 0
        %384 = vmatpush1.bf16.msra.mxu0 0
        %385 = vmatprep.subr.bf16.mxu0 0
        %386 = vmatpush1.bf16.msra.mxu0 0
        %387 = vmatprep.subr.bf16.mxu0 0
        %388 = vmatpush1.bf16.msra.mxu0 0
        %389 = vmatprep.subr.bf16.mxu0 0
        %390 = vmatpush1.bf16.msra.mxu0 0
        %391 = vmatprep.subr.bf16.mxu0 0
        %392 = vmatpush1.bf16.msra.mxu0 0
        %393 = vmatprep.subr.bf16.mxu0 0
        %394 = vmatpush1.bf16.msra.mxu0 0
        %395 = vmatprep.subr.bf16.mxu0 0
        %396 = vmatpush1.bf16.msra.mxu0 0
        %397 = vmatprep.subr.bf16.mxu0 0
        %398 = vmatpush1.bf16.msra.mxu0 0
        %399 = vmatprep.subr.bf16.mxu0 0
        %400 = vmatpush1.bf16.msra.mxu0 0
        %401 = vmatprep.mubr.bf16.mxu0 0
        %402 = vmatmul.mubr.bf16.gmra.mrb[0].mxu0 %v367
        %v403 = vpop.f32.mrb[0].mxu0
        %v404 = vadd.f32 %v321, %v403
        %v405 = vpop.f32.mrb[0].mxu0
        %v406 = vadd.f32 %v325, %v405
        %v407 = vpop.f32.mrb[0].mxu0
        %v408 = vpop.f32.mrb[0].mxu0
        %409 = vdwg.mxu0
        %410 = vmatprep.subr.bf16.mxu0 0
        %411 = vmatpush1.bf16.msra.mxu0 %v355
        %412 = vmatprep.subr.bf16.mxu0 0
        %413 = vmatpush1.bf16.msra.mxu0 %v358
        %414 = vmatprep.subr.bf16.mxu0 0
        %415 = vmatpush1.bf16.msra.mxu0 0
        %416 = vmatprep.subr.bf16.mxu0 0
        %417 = vmatpush1.bf16.msra.mxu0 0
        %418 = vmatprep.subr.bf16.mxu0 0
        %419 = vmatpush1.bf16.msra.mxu0 0
        %420 = vmatprep.subr.bf16.mxu0 0
        %421 = vmatpush1.bf16.msra.mxu0 0
        %422 = vmatprep.subr.bf16.mxu0 0
        %423 = vmatpush1.bf16.msra.mxu0 0
        %424 = vmatprep.subr.bf16.mxu0 0
        %425 = vmatpush1.bf16.msra.mxu0 0
        %426 = vmatprep.subr.bf16.mxu0 0
        %427 = vmatpush1.bf16.msra.mxu0 0
        %428 = vmatprep.subr.bf16.mxu0 0
        %429 = vmatpush1.bf16.msra.mxu0 0
        %430 = vmatprep.subr.bf16.mxu0 0
        %431 = vmatpush1.bf16.msra.mxu0 0
        %432 = vmatprep.subr.bf16.mxu0 0
        %433 = vmatpush1.bf16.msra.mxu0 0
        %434 = vmatprep.subr.bf16.mxu0 0
        %435 = vmatpush1.bf16.msra.mxu0 0
        %436 = vmatprep.subr.bf16.mxu0 0
        %437 = vmatpush1.bf16.msra.mxu0 0
        %438 = vmatprep.subr.bf16.mxu0 0
        %439 = vmatpush1.bf16.msra.mxu0 0
        %440 = vmatprep.subr.bf16.mxu0 0
        %441 = vmatpush1.bf16.msra.mxu0 0
        %442 = vmatprep.mubr.bf16.mxu0 0
        %443 = vmatmul.mubr.bf16.gmra.mrb[0].mxu0 %v367
        %v444 = vpop.f32.mrb[0].mxu0
        %v445 = vadd.f32 %v329, %v444
        %v446 = vpop.f32.mrb[0].mxu0
        %v447 = vpop.f32.mrb[0].mxu0
        %v448 = vpop.f32.mrb[0].mxu0
        %449 = vdwg.mxu0
        %v450 = vpack.c.bf16 %v404, %v404
        %451 = vst [vmem:[%s291] sm:$0xf] %v450
        %452 = vxpose.xlu0.b32.start [1/16] %v406, 128
        %453 = vxpose.xlu0.b32.cont [2/16] 0.0, 128
        %454 = vxpose.xlu0.b32.cont [3/16] 0.0, 128
        %455 = vxpose.xlu0.b32.cont [4/16] 0.0, 128
        %456 = vxpose.xlu0.b32.cont [5/16] 0.0, 128
        %457 = vxpose.xlu0.b32.cont [6/16] 0.0, 128
        %458 = vxpose.xlu0.b32.cont [7/16] 0.0, 128
        %459 = vxpose.xlu0.b32.cont [8/16] 0.0, 128
        %460 = vxpose.xlu0.b32.cont [9/16] 0.0, 128
        %461 = vxpose.xlu0.b32.cont [10/16] 0.0, 128
        %462 = vxpose.xlu0.b32.cont [11/16] 0.0, 128
        %463 = vxpose.xlu0.b32.cont [12/16] 0.0, 128
        %464 = vxpose.xlu0.b32.cont [13/16] 0.0, 128
        %465 = vxpose.xlu0.b32.cont [14/16] 0.0, 128
        %466 = vxpose.xlu0.b32.cont [15/16] 0.0, 128
        %467 = vxpose.xlu0.b32.end [16/16] 0.0, 128
        %v468 = vpop.trf.xlu0
        %v469 = vpop.trf.xlu0
        %v470 = vpop.trf.xlu0
        %v471 = vpop.trf.xlu0
        %v472 = vpop.trf.xlu0
        %v473 = vpop.trf.xlu0
        %v474 = vpop.trf.xlu0
        %v475 = vpop.trf.xlu0
        %v476 = vpop.trf.xlu0
        %v477 = vpop.trf.xlu0
        %v478 = vpop.trf.xlu0
        %v479 = vpop.trf.xlu0
        %v480 = vpop.trf.xlu0
        %v481 = vpop.trf.xlu0
        %v482 = vpop.trf.xlu0
        %v483 = vpop.trf.xlu0
        %v484 = vpack.c.bf16 %v469, %v468
        %v485 = vpack.c.bf16 %v471, %v470
        %v486 = vpack.c.bf16 %v473, %v472
        %v487 = vpack.c.bf16 %v475, %v474
        %v488 = vpack.c.bf16 %v477, %v476
        %v489 = vpack.c.bf16 %v479, %v478
        %v490 = vpack.c.bf16 %v481, %v480
        %v491 = vpack.c.bf16 %v483, %v482
        %v500 = vunpack.c.l.b16 %v484
        %v501 = vunpack.c.h.b16 %v484
        %v502 = vunpack.c.l.b16 %v485
        %v503 = vunpack.c.h.b16 %v485
        %v504 = vunpack.c.l.b16 %v486
        %v505 = vunpack.c.h.b16 %v486
        %v506 = vunpack.c.l.b16 %v487
        %v507 = vunpack.c.h.b16 %v487
        %v508 = vunpack.c.l.b16 %v488
        %v509 = vunpack.c.h.b16 %v488
        %v510 = vunpack.c.l.b16 %v489
        %v511 = vunpack.c.h.b16 %v489
        %v512 = vunpack.c.l.b16 %v490
        %v513 = vunpack.c.h.b16 %v490
        %v514 = vunpack.c.l.b16 %v491
        %v515 = vunpack.c.h.b16 %v491
        %v516 = vpack.c.b16 %v500, %v500
        %v517 = vpack.c.b16 %v501, %v501
        %v518 = vpack.c.b16 %v502, %v502
        %v519 = vpack.c.b16 %v503, %v503
        %v520 = vpack.c.b16 %v504, %v504
        %v521 = vpack.c.b16 %v505, %v505
        %v522 = vpack.c.b16 %v506, %v506
        %v523 = vpack.c.b16 %v507, %v507
        %v524 = vpack.c.b16 %v508, %v508
        %v525 = vpack.c.b16 %v509, %v509
        %v526 = vpack.c.b16 %v510, %v510
        %v527 = vpack.c.b16 %v511, %v511
        %v528 = vpack.c.b16 %v512, %v512
        %v529 = vpack.c.b16 %v513, %v513
        %v530 = vpack.c.b16 %v514, %v514
        %v531 = vpack.c.b16 %v515, %v515
        %vm548 = vcmask 60416
        %549 = vst.msk [vmem:[%s298] sm:$0xf] %vm548, %v516
        %550 = vst.msk [vmem:[%s298 + $0x4] sm:$0xf] %vm548, %v517
        %551 = vst.msk [vmem:[%s298 + $0x8] sm:$0xf] %vm548, %v518
        %552 = vst.msk [vmem:[%s298 + $0xc] sm:$0xf] %vm548, %v519
        %553 = vst.msk [vmem:[%s298 + $0x10] sm:$0xf] %vm548, %v520
        %554 = vst.msk [vmem:[%s298 + $0x14] sm:$0xf] %vm548, %v521
        %555 = vst.msk [vmem:[%s298 + $0x18] sm:$0xf] %vm548, %v522
        %556 = vst.msk [vmem:[%s298 + $0x1c] sm:$0xf] %vm548, %v523
        %557 = vst.msk [vmem:[%s298 + $0x20] sm:$0xf] %vm548, %v524
        %558 = vst.msk [vmem:[%s298 + $0x24] sm:$0xf] %vm548, %v525
        %559 = vst.msk [vmem:[%s298 + $0x28] sm:$0xf] %vm548, %v526
        %560 = vst.msk [vmem:[%s298 + $0x2c] sm:$0xf] %vm548, %v527
        %561 = vst.msk [vmem:[%s298 + $0x30] sm:$0xf] %vm548, %v528
        %562 = vst.msk [vmem:[%s298 + $0x34] sm:$0xf] %vm548, %v529
        %563 = vst.msk [vmem:[%s298 + $0x38] sm:$0xf] %vm548, %v530
        %564 = vst.msk [vmem:[%s298 + $0x3c] sm:$0xf] %vm548, %v531
        %v565 = vpack.c.bf16 %v445, %v445
        %566 = vst [vmem:[%s305] sm:$0xf] %v565
        %s567 = sand.u32 %s119, 1
        %s568 = scalar_lea.sflag [#allocation4], %s567
        %s569 = sand.u32 %s119, 1
        %s570 = smul.addr %s569, 4
        %s571 = scalar_lea.vmem [#allocation8], %s570
        %s572 = sand.u32 %s27, 1
        %s573 = scalar_lea.sflag [#allocation10], %s572
        %s574 = sand.u32 %s147, 1
        %s575 = smul.addr %s574, 64
        %s576 = scalar_lea.vmem [#allocation9], %s575
        %s577 = sand.u32 %s27, 1
        %s578 = scalar_lea.sflag [#allocation10], %s577
        %s579 = sand.u32 %s175, 1
        %s580 = smul.addr %s579, 4
        %s581 = scalar_lea.vmem [#allocation11], %s580
        // Predicated region
        $region45: #{tpu_custom_call.1} parent=31 // pred_check
          %p582 = pneg %p129
        $region46: #{tpu_custom_call.1} parent=31 // pred_check_branch
          %584 = sbr.rel (%p582) target = $region48
        $region47: #{tpu_custom_call.1} parent=31 // pred_region
          %s586 = ssub.s32 64, 64
          %587 = vsyncadd %s568, %s586
          %s588 = sadd.s32 %s32, %s31
          %s589 = smul.addr %s588, 64
          %s590 = scalar_lea.hbm %s3, %s589
          %s592 = sshll.u32 %s571, 4
          %s593 = int_to_ptr.vmem [resolvable:$true] %s592
          %595 = dma.vmem_to_hbm [thread:$0]  %s593, 64, %s590, %s568
        $region48: #{tpu_custom_call.1} parent=31 // pred_fallthru
          _
        // Predicated region
        $region49: #{tpu_custom_call.1} parent=31 // pred_check
          %p596 = pneg %p157
        $region50: #{tpu_custom_call.1} parent=31 // pred_check_branch
          %598 = sbr.rel (%p596) target = $region52
        $region51: #{tpu_custom_call.1} parent=31 // pred_region
          %s600 = ssub.s32 1024, 1024
          %601 = vsyncadd %s573, %s600
          %s602 = smul.addr %s31, 16
          %s603 = sadd.s32 %s32, %s602
          %s604 = smul.addr %s603, 64
          %s605 = scalar_lea.hbm %s4, %s604
          %s606 = sshll.u32 %s576, 4
          %s607 = int_to_ptr.vmem [resolvable:$true] %s606
          %612 = dma.vmem_to_hbm [thread:$0]  %s607, 1024, %s605, %s573, 64, 64, 4
        $region52: #{tpu_custom_call.1} parent=31 // pred_fallthru
          _
        // Predicated region
        $region53: #{tpu_custom_call.1} parent=31 // pred_check
          %p613 = pneg %p185
        $region54: #{tpu_custom_call.1} parent=31 // pred_check_branch
          %615 = sbr.rel (%p613) target = $region56
        $region55: #{tpu_custom_call.1} parent=31 // pred_region
          %s617 = ssub.s32 64, 64
          %618 = vsyncadd %s578, %s617
          %s619 = sadd.s32 %s32, %s31
          %s620 = smul.addr %s619, 64
          %s621 = scalar_lea.hbm %s5, %s620
          %s623 = sshll.u32 %s581, 4
          %s624 = int_to_ptr.vmem [resolvable:$true] %s623
          %626 = dma.vmem_to_hbm [thread:$0]  %s624, 64, %s621, %s578
        $region56: #{tpu_custom_call.1} parent=31 // pred_fallthru
          _
      $region32: #{tpu_custom_call.1} parent=5 // pred_fallthru
        _
      %p627 = scmp.le.s32.totalorder 2, %s22
      // Predicated region
      $region57: #{tpu_custom_call.1} parent=5 // pred_check
        %p628 = pneg %p627
      $region58: #{tpu_custom_call.1} parent=5 // pred_check_branch
        %630 = sbr.rel (%p628) target = $region60
      $region59: #{tpu_custom_call.1} parent=5 // pred_region
        %s631 = ssub.s32 %s22, 2
        // Predicated region
        $region61: #{tpu_custom_call.1} parent=59 // pred_check
          %p632 = pneg %p135
        $region62: #{tpu_custom_call.1} parent=59 // pred_check_branch
          %634 = sbr.rel (%p632) target = $region64
        $region63: #{tpu_custom_call.1} parent=59 // pred_region
          %s635 = sand.u32 %s120, 1
          %s636 = scalar_lea.sflag [#allocation4], %s635
          %s637 = sand.u32 %s120, 1
          %s638 = smul.addr %s637, 4
          %s639 = scalar_lea.vmem [#allocation8], %s638
          %640 = dma.done %s636, 64
        $region64: #{tpu_custom_call.1} parent=59 // pred_fallthru
          _
        // Predicated region
        $region65: #{tpu_custom_call.1} parent=59 // pred_check
          %p641 = pneg %p163
        $region66: #{tpu_custom_call.1} parent=59 // pred_check_branch
          %643 = sbr.rel (%p641) target = $region68
        $region67: #{tpu_custom_call.1} parent=59 // pred_region
          %s644 = sand.u32 %s28, 1
          %s645 = scalar_lea.sflag [#allocation10], %s644
          %s646 = sand.u32 %s148, 1
          %s647 = smul.addr %s646, 64
          %s648 = scalar_lea.vmem [#allocation9], %s647
          %649 = dma.done %s645, 1024
        $region68: #{tpu_custom_call.1} parent=59 // pred_fallthru
          _
        // Predicated region
        $region69: #{tpu_custom_call.1} parent=59 // pred_check
          %p650 = pneg %p191
        $region70: #{tpu_custom_call.1} parent=59 // pred_check_branch
          %652 = sbr.rel (%p650) target = $region72
        $region71: #{tpu_custom_call.1} parent=59 // pred_region
          %s653 = sand.u32 %s28, 1
          %s654 = scalar_lea.sflag [#allocation10], %s653
          %s655 = sand.u32 %s176, 1
          %s656 = smul.addr %s655, 4
          %s657 = scalar_lea.vmem [#allocation11], %s656
          %658 = dma.done %s654, 64
        $region72: #{tpu_custom_call.1} parent=59 // pred_fallthru
          _
      $region60: #{tpu_custom_call.1} parent=5 // pred_fallthru
        _
    $region6: #{tpu_custom_call.1} parent=1 // loop_footer
      %s26 = sadd.s32 1, %s22
    $region7: #{tpu_custom_call.1} parent=1 // loop_footer_branch
      %21 = sbr.rel target = $region3
    $region8: #{tpu_custom_call.1} parent=1 // loop_exit
      _
    %659 = vsyncpa [#allocation3], 1
    %s660 = scalar_lea.sflag [#allocation3], 1
    %661 = vsyncpa %s660, 1
    %662 = vsyncpa [#allocation6], 1
    %663 = vsyncpa [#allocation4], 1
    %s664 = scalar_lea.sflag [#allocation4], 1
    %665 = vsyncpa %s664, 1
    %666 = vsyncpa [#allocation10], 1
    %s667 = scalar_lea.sflag [#allocation10], 1
    %668 = vsyncpa %s667, 1

</llo_original>
